<compile_context>
chip_gen: v6e
topology: v6e:2x2x1
jax: 0.10.0
libtpu: 0.0.40
codegen_flags: <defaults>
</compile_context>

<pallas_src>
import jax
import jax.numpy as jnp
import numpy as np
from jax import lax
from jax.experimental import pallas as pl
from jax.experimental.pallas import tpu as pltpu

SOFT_SCALE = 20.0
NUM_HEAD = 5
IN_C = 3        # in_channels of NonLocalBlockND
INTER_C = 8     # inter_channels of NonLocalBlockND


def _angle_kernel(temp_ref, aL_ref, aR_ref, out_ref):
    """Cosine angle between (temp - anchor_left) and (temp - anchor_right).

    temp_ref : (B, IN_C, TL)  f32, lane-dense (TL = tile of T*V)
    aL_ref   : (1, B, IN_C)   f32, per-head left anchors
    aR_ref   : (1, B, IN_C)   f32, per-head right anchors
    out_ref  : (1, B, TL)     f32
    """
    temp = temp_ref[...]            # (B, IN_C, TL)
    aL = aL_ref[...]                # (1, B, IN_C)
    aR = aR_ref[...]

    dot = None
    na2 = None
    nb2 = None
    for c in range(IN_C):
        tc = temp[:, c, :]                      # (B, TL)
        ac = tc - aL[0, :, c:c + 1]             # (B, 1) broadcast over lanes
        bc = tc - aR[0, :, c:c + 1]
        d, a2, b2 = ac * bc, ac * ac, bc * bc
        dot = d if dot is None else dot + d
        na2 = a2 if na2 is None else na2 + a2
        nb2 = b2 if nb2 is None else nb2 + b2

    # dot / (max(||a||,1e-6) * max(||b||,1e-6))
    #   == dot * rsqrt(max(na2,1e-12)) * rsqrt(max(nb2,1e-12))   (sqrt monotone)
    inv_a = lax.rsqrt(jnp.maximum(na2, 1e-12))
    inv_b = lax.rsqrt(jnp.maximum(nb2, 1e-12))
    out_ref[0] = dot * inv_a * inv_b


def _anchors(params, xm):
    """Per-head soft-attention anchors for one side.

    params: (wg (H,3,3), bg (H,3), wt (H,8,3), bt (H,8), wp (H,8,3), bp (H,8))
    xm    : (B, 3, V)  head-invariant temporal mean
    returns (H, B, 3)
    """
    wg, bg, wt, bt, wp, bp = params
    th = jnp.einsum('hkc,bcv->hbkv', wt, xm) + bt[:, None, :, None]   # (H,B,8,V)
    ph = jnp.einsum('hkc,bcv->hbkv', wp, xm) + bp[:, None, :, None]   # (H,B,8,V)
    # f.sum(-1) == sum_k theta_k[b,v] * (sum_w phi_k[b,w])  (algebraically identical)
    logits = jnp.einsum('hbkv,hbk->hbv', th, ph.sum(-1)) * SOFT_SCALE  # (H,B,V)
    dis = jax.nn.softmax(logits, axis=-1)                              # (H,B,V)
    g = jnp.einsum('hoc,bcv->hbov', wg, xm) + bg[:, None, :, None]     # (H,B,3,V)
    return jnp.einsum('hbov,hbv->hbo', g, dis)                         # (H,B,3)


def sap_forward(x, left_params, right_params):
    """x: (N, T, 2*V*3) float32.  Returns (N, NUM_HEAD, T, V, 2)."""
    N, T, D = x.shape
    V = D // (2 * IN_C)
    B = N * 2
    L = T * V

    # torch: input.view(N,T,2,-1,3).permute(0,2,4,1,3).view(N*2, 3, T, V)
    temp4 = (x.reshape(N, T, 2, V, IN_C)
               .transpose(0, 2, 4, 1, 3)
               .reshape(B, IN_C, T, V)
               .astype(jnp.float32))

    # Head-invariant temporal mean + tiny per-head anchor math, computed ONCE
    # (hoisted out of the per-head grid as per perf review).
    xm = temp4.mean(axis=2)                        # (B, 3, V)
    aL = _anchors(left_params, xm)                 # (NUM_HEAD, B, 3)
    aR = _anchors(right_params, xm)                # (NUM_HEAD, B, 3)

    # Lane-dense view: T*V flattened onto the lane axis.
    temp = temp4.reshape(B, IN_C, L)

    # Lane-tile size: multiple of 128 when possible, full extent otherwise.
    if L % 128 == 0:
        tl = min(L, 2048)
    else:
        tl = L
    num_l = pl.cdiv(L, tl)

    out = pl.pallas_call(
        _angle_kernel,
        out_shape=jax.ShapeDtypeStruct((NUM_HEAD, B, L), jnp.float32),
        grid_spec=pltpu.PrefetchScalarGridSpec(
            num_scalar_prefetch=0,
            # head innermost: temp tile block index constant across heads ->
            # each HBM tile fetched once and reused by all 5 heads.
            grid=(num_l, NUM_HEAD),
            in_specs=[
                pl.BlockSpec((B, IN_C, tl), lambda l, h: (0, 0, l)),
                pl.BlockSpec((1, B, IN_C), lambda l, h: (h, 0, 0)),
                pl.BlockSpec((1, B, IN_C), lambda l, h: (h, 0, 0)),
            ],
            out_specs=pl.BlockSpec((1, B, tl), lambda l, h: (h, 0, l)),
        ),
        compiler_params=pltpu.CompilerParams(
            dimension_semantics=("parallel", "arbitrary")),
    )(temp, aL, aR)

    # out[h, n*2+m, t*V+v] -> angle[n, h, t, v, m]   (matches torch permutes)
    angle = out.reshape(NUM_HEAD, N, 2, T, V).transpose(1, 0, 3, 4, 2)
    return angle


def init_side_params(key):
    """Per-side parameters for NUM_HEAD NonLocalBlockND(3, 8, 1, False) blocks.
    g: Conv1d(3->3,k=1); theta: Conv1d(3->8,k=1); phi: Conv1d(3->8,k=1).
    (W / BatchNorm are unused on this code path.)"""
    ks = jax.random.split(key, 6)
    u = lambda k, shape, b: jax.random.uniform(k, shape, jnp.float32, -b, b)
    bnd = 1.0 / np.sqrt(IN_C)
    wg = u(ks[0], (NUM_HEAD, IN_C, IN_C), bnd)
    bg = u(ks[1], (NUM_HEAD, IN_C), bnd)
    wt = u(ks[2], (NUM_HEAD, INTER_C, IN_C), bnd)
    bt = u(ks[3], (NUM_HEAD, INTER_C), bnd)
    wp = u(ks[4], (NUM_HEAD, INTER_C, IN_C), bnd)
    bp = u(ks[5], (NUM_HEAD, INTER_C), bnd)
    return (wg, bg, wt, bt, wp, bp)


def sap_reference(x, left_params, right_params):
    """Pure-JAX re-implementation of the PyTorch forward for verification."""
    N, T, D = x.shape
    V = D // (2 * IN_C)
    B = N * 2
    temp = (x.reshape(N, T, 2, V, IN_C).transpose(0, 2, 4, 1, 3)
              .reshape(B, IN_C, T, V).astype(jnp.float32))
    xm = temp.mean(axis=2)  # (B,3,V)

    def block(wg, bg, wt, bt, wp, bp):
        g_x = jnp.einsum('oc,bcv->bov', wg, xm) + bg[None, :, None]
        g_x = g_x.transpose(0, 2, 1)                                   # (B,V,3)
        th = (jnp.einsum('kc,bcv->bkv', wt, xm) + bt[None, :, None]).transpose(0, 2, 1)
        ph = jnp.einsum('kc,bcv->bkv', wp, xm) + bp[None, :, None]     # (B,8,V)
        f = jnp.einsum('bvk,bkw->bvw', th, ph)
        dis = jax.nn.softmax(f.sum(-1) * SOFT_SCALE, axis=-1)          # (B,V)
        anchor = jnp.einsum('bvc,bv->bc', g_x, dis)                    # (B,3)
        return temp - anchor[:, :, None, None]                         # (B,3,T,V)

    angles = []
    for h in range(NUM_HEAD):
        rl = block(*[p[h] for p in left_params])
        rr = block(*[p[h] for p in right_params])
        rl_f = rl.transpose(2, 0, 3, 1).reshape(-1, IN_C)
        rr_f = rr.transpose(2, 0, 3, 1).reshape(-1, IN_C)
        dot = jnp.sum(rl_f * rr_f, axis=1)
        na = jnp.maximum(jnp.linalg.norm(rl_f, axis=1), 1e-6)
        nb = jnp.maximum(jnp.linalg.norm(rr_f, axis=1), 1e-6)
        angles.append((dot / (na * nb)).reshape(-1, 1))
    ang = jnp.concatenate(angles, axis=1).reshape(T, N, 2, V, NUM_HEAD)
    return ang.transpose(1, 4, 0, 3, 2)


if __name__ == "__main__":
    key = jax.random.PRNGKey(0)
    k_x, k_l, k_r = jax.random.split(key, 3)

    N, T, V = 2, 8, 8
    x = jax.random.normal(k_x, (N, T, 2 * V * IN_C), dtype=jnp.float32)

    left_params = init_side_params(k_l)
    right_params = init_side_params(k_r)

    out = sap_forward(x, left_params, right_params)
    out = jax.block_until_ready(out)

    ref = jax.block_until_ready(sap_reference(x, left_params, right_params))

    assert out.shape == (N, NUM_HEAD, T, V, 2), out.shape
    np.testing.assert_allclose(np.asarray(out), np.asarray(ref), rtol=1e-4, atol=1e-4)
    print("KERNEL_OK")
</pallas_src>

<mosaic_0001>
module attributes {stable_mosaic.version = 11 : i64} {
  func.func @_angle_kernel(%arg0: i32, %arg1: i32, %arg2: memref<4x3x64xf32, #tpu.memory_space<vmem>>, %arg3: memref<1x4x3xf32, #tpu.memory_space<vmem>>, %arg4: memref<1x4x3xf32, #tpu.memory_space<vmem>>, %arg5: memref<1x4x64xf32, #tpu.memory_space<vmem>>) attributes {dimension_semantics = [#tpu.dimension_semantics<parallel>, #tpu.dimension_semantics<arbitrary>], iteration_bounds = array<i64: 1, 5>, scalar_prefetch = 0 : i64, scratch_operands = 0 : i64, tpu.core_type = #tpu.core_type<tc>, window_params = [{transform_indices = @transform_0, window_bounds = array<i64: 4, 3, 64>}, {transform_indices = @transform_1, window_bounds = array<i64: 1, 4, 3>}, {transform_indices = @transform_2, window_bounds = array<i64: 1, 4, 3>}, {transform_indices = @transform_3, window_bounds = array<i64: 1, 4, 64>}]} {
    %c0 = arith.constant 0 : index
    %c0_0 = arith.constant 0 : index
    %c0_1 = arith.constant 0 : index
    %0 = vector.load %arg2[%c0, %c0_0, %c0_1] : memref<4x3x64xf32, #tpu.memory_space<vmem>>, vector<4x3x64xf32>
    %c0_2 = arith.constant 0 : index
    %c0_3 = arith.constant 0 : index
    %c0_4 = arith.constant 0 : index
    %1 = vector.load %arg3[%c0_2, %c0_3, %c0_4] : memref<1x4x3xf32, #tpu.memory_space<vmem>>, vector<1x4x3xf32>
    %c0_5 = arith.constant 0 : index
    %c0_6 = arith.constant 0 : index
    %c0_7 = arith.constant 0 : index
    %2 = vector.load %arg4[%c0_5, %c0_6, %c0_7] : memref<1x4x3xf32, #tpu.memory_space<vmem>>, vector<1x4x3xf32>
    %3 = vector.extract_strided_slice %0 {offsets = [0, 0, 0], sizes = [4, 1, 64], strides = [1, 1, 1]} : vector<4x3x64xf32> to vector<4x1x64xf32>
    %4 = vector.shape_cast %3 : vector<4x1x64xf32> to vector<4x64xf32>
    %5 = vector.extract_strided_slice %1 {offsets = [0, 0, 0], sizes = [1, 4, 1], strides = [1, 1, 1]} : vector<1x4x3xf32> to vector<1x4x1xf32>
    %6 = vector.shape_cast %5 : vector<1x4x1xf32> to vector<4x1xf32>
    %7 = vector.broadcast %6 : vector<4x1xf32> to vector<4x64xf32>
    %8 = arith.subf %4, %7 : vector<4x64xf32>
    %9 = vector.extract_strided_slice %2 {offsets = [0, 0, 0], sizes = [1, 4, 1], strides = [1, 1, 1]} : vector<1x4x3xf32> to vector<1x4x1xf32>
    %10 = vector.shape_cast %9 : vector<1x4x1xf32> to vector<4x1xf32>
    %11 = vector.broadcast %10 : vector<4x1xf32> to vector<4x64xf32>
    %12 = arith.subf %4, %11 : vector<4x64xf32>
    %13 = arith.mulf %8, %12 : vector<4x64xf32>
    %14 = arith.mulf %8, %8 : vector<4x64xf32>
    %15 = arith.mulf %12, %12 : vector<4x64xf32>
    %16 = vector.extract_strided_slice %0 {offsets = [0, 1, 0], sizes = [4, 1, 64], strides = [1, 1, 1]} : vector<4x3x64xf32> to vector<4x1x64xf32>
    %17 = vector.shape_cast %16 : vector<4x1x64xf32> to vector<4x64xf32>
    %18 = vector.extract_strided_slice %1 {offsets = [0, 0, 1], sizes = [1, 4, 1], strides = [1, 1, 1]} : vector<1x4x3xf32> to vector<1x4x1xf32>
    %19 = vector.shape_cast %18 : vector<1x4x1xf32> to vector<4x1xf32>
    %20 = vector.broadcast %19 : vector<4x1xf32> to vector<4x64xf32>
    %21 = arith.subf %17, %20 : vector<4x64xf32>
    %22 = vector.extract_strided_slice %2 {offsets = [0, 0, 1], sizes = [1, 4, 1], strides = [1, 1, 1]} : vector<1x4x3xf32> to vector<1x4x1xf32>
    %23 = vector.shape_cast %22 : vector<1x4x1xf32> to vector<4x1xf32>
    %24 = vector.broadcast %23 : vector<4x1xf32> to vector<4x64xf32>
    %25 = arith.subf %17, %24 : vector<4x64xf32>
    %26 = arith.mulf %21, %25 : vector<4x64xf32>
    %27 = arith.mulf %21, %21 : vector<4x64xf32>
    %28 = arith.mulf %25, %25 : vector<4x64xf32>
    %29 = arith.addf %13, %26 : vector<4x64xf32>
    %30 = arith.addf %14, %27 : vector<4x64xf32>
    %31 = arith.addf %15, %28 : vector<4x64xf32>
    %32 = vector.extract_strided_slice %0 {offsets = [0, 2, 0], sizes = [4, 1, 64], strides = [1, 1, 1]} : vector<4x3x64xf32> to vector<4x1x64xf32>
    %33 = vector.shape_cast %32 : vector<4x1x64xf32> to vector<4x64xf32>
    %34 = vector.extract_strided_slice %1 {offsets = [0, 0, 2], sizes = [1, 4, 1], strides = [1, 1, 1]} : vector<1x4x3xf32> to vector<1x4x1xf32>
    %35 = vector.shape_cast %34 : vector<1x4x1xf32> to vector<4x1xf32>
    %36 = vector.broadcast %35 : vector<4x1xf32> to vector<4x64xf32>
    %37 = arith.subf %33, %36 : vector<4x64xf32>
    %38 = vector.extract_strided_slice %2 {offsets = [0, 0, 2], sizes = [1, 4, 1], strides = [1, 1, 1]} : vector<1x4x3xf32> to vector<1x4x1xf32>
    %39 = vector.shape_cast %38 : vector<1x4x1xf32> to vector<4x1xf32>
    %40 = vector.broadcast %39 : vector<4x1xf32> to vector<4x64xf32>
    %41 = arith.subf %33, %40 : vector<4x64xf32>
    %42 = arith.mulf %37, %41 : vector<4x64xf32>
    %43 = arith.mulf %37, %37 : vector<4x64xf32>
    %44 = arith.mulf %41, %41 : vector<4x64xf32>
    %45 = arith.addf %29, %42 : vector<4x64xf32>
    %46 = arith.addf %30, %43 : vector<4x64xf32>
    %47 = arith.addf %31, %44 : vector<4x64xf32>
    %cst = arith.constant 9.99999996E-13 : f32
    %48 = vector.broadcast %cst : f32 to vector<4x64xf32>
    %49 = arith.maximumf %46, %48 : vector<4x64xf32>
    %50 = math.rsqrt %49 : vector<4x64xf32>
    %cst_8 = arith.constant 9.99999996E-13 : f32
    %51 = vector.broadcast %cst_8 : f32 to vector<4x64xf32>
    %52 = arith.maximumf %47, %51 : vector<4x64xf32>
    %53 = math.rsqrt %52 : vector<4x64xf32>
    %54 = arith.mulf %45, %50 : vector<4x64xf32>
    %55 = arith.mulf %54, %53 : vector<4x64xf32>
    %c0_9 = arith.constant 0 : index
    %c0_10 = arith.constant 0 : index
    %c0_11 = arith.constant 0 : index
    %56 = vector.load %arg5[%c0_9, %c0_10, %c0_11] : memref<1x4x64xf32, #tpu.memory_space<vmem>>, vector<1x4x64xf32>
    %57 = vector.shape_cast %56 : vector<1x4x64xf32> to vector<4x64xf32>
    %58 = vector.shape_cast %55 : vector<4x64xf32> to vector<1x4x64xf32>
    tpu.vector_store %arg5[%c0_9, %c0_10, %c0_11], %58 {strides = array<i32>} : memref<1x4x64xf32, #tpu.memory_space<vmem>>, vector<1x4x64xf32>,
    return
  }
  func.func @transform_0(%arg0: i32, %arg1: i32) -> (i32, i32, i32) {
    %c0_i32 = arith.constant 0 : i32
    %c0_i32_0 = arith.constant 0 : i32
    %c0_i32_1 = arith.constant 0 : i32
    return %c0_i32, %c0_i32_0, %arg0 : i32, i32, i32
  }
  func.func @transform_1(%arg0: i32, %arg1: i32) -> (i32, i32, i32) {
    %c0_i32 = arith.constant 0 : i32
    %c0_i32_0 = arith.constant 0 : i32
    %c0_i32_1 = arith.constant 0 : i32
    return %arg1, %c0_i32, %c0_i32_0 : i32, i32, i32
  }
  func.func @transform_2(%arg0: i32, %arg1: i32) -> (i32, i32, i32) {
    %c0_i32 = arith.constant 0 : i32
    %c0_i32_0 = arith.constant 0 : i32
    %c0_i32_1 = arith.constant 0 : i32
    return %arg1, %c0_i32, %c0_i32_0 : i32, i32, i32
  }
  func.func @transform_3(%arg0: i32, %arg1: i32) -> (i32, i32, i32) {
    %c0_i32 = arith.constant 0 : i32
    %c0_i32_0 = arith.constant 0 : i32
    return %arg1, %c0_i32, %arg0 : i32, i32, i32
  }
}

</mosaic_0001>

<llo_original>
// kernel: tpu_custom_call.1
$region0: #{tpu_custom_call.1}
  #allocation0 [shape = 'u32[]', space=smem, size = 0x4, offset = 0x4, fixed_abs, tag = 'smem constant byte address 0x4 - core index']
  #allocation1 [shape = 'u32[144,128]{1,0:T(1,128)}', space=vmem, size = 0x12000, scoped, tag = 'internal scratch']
  %s0 = inlined_call_operand.vmem [shape: f32[4,3,64], index: 0, kind: input, shape index: {}]
  %s1 = inlined_call_operand.vmem [shape: f32[5,4,3], index: 1, kind: input, shape index: {}]
  %s2 = inlined_call_operand.vmem [shape: f32[5,4,3], index: 2, kind: input, shape index: {}]
  %s3 = inlined_call_operand.hbm [shape: f32[5,4,64], index: 3, kind: output, shape index: {}]
  %s4 = sld [smem:[#allocation0]]
  $region45: #{tpu_custom_call.1} parent=0
    _
  %s6 = ssub.s32 1, %s4
  %s7 = scalar_select 0, %s6, %s4
  $region1: #{tpu_custom_call.1} parent=0
    #allocation2 [shape = 'u8[4096]{0}', space=vmem, size = 0x1000, scoped, tag = 'output window, operand 0']
    #allocation3 [shape = 's32[2]{0}', space=sflag, size = 0x8, scoped, tag = 'scoped memory for tpu_custom_call.1']
    %8 = vsyncpa [#allocation3], 0
    %s9 = scalar_lea.sflag [#allocation3], 1
    %10 = vsyncpa %s9, 0
    loop: start=0, step=1, limit=7
    $region2: #{tpu_custom_call.1} parent=1 // loop_pre_header
      _
    $region3: #{tpu_custom_call.1} parent=1 // loop_header
      %s12 = sphi 0, %s16
      %p13 = scmp.ge.s32.totalorder %s12, 7
      %s19 = sphi 0, %s31
      %s20 = sphi 0, %s27
      %s21 = sphi 0, %s19
      %s22 = sphi 0, %s20
      %s23 = sphi 0, %s21
      %s24 = sphi 0, %s22
      %s34 = sphi 0, %s36
      %s37 = sphi 0, %s34
      %s38 = sphi 0, %s37
      %s54 = sphi 0, %s38
      %s60 = sphi 0, %s62
      %s63 = sphi 0, %s60
      %s64 = sphi 0, %s63
      %s80 = sphi 0, %s64
      %s86 = sphi 0, %s88
      %s89 = sphi 0, %s86
      %s90 = sphi 0, %s89
      %s106 = sphi 0, %s90
      %s114 = sphi 0, %s116
      %s117 = sphi 0, %s114
      %s118 = sphi 0, %s117
      %s134 = sphi 0, %s118
    $region4: #{tpu_custom_call.1} parent=1 // loop_header_branch
      %15 = sbr.rel (%p13) target = $region8
    $region5: #{tpu_custom_call.1} parent=1 // loop_body
      %s17 = ssub.s32 %s12, 1
      %s18 = ssub.s32 %s12, 2
      %s25 = sadd.s32 1, %s20
      %p26 = scmp.ge.s32.totalorder %s25, 5
      %s27 = scalar_select %p26, 0, %s25
      %s28 = sadd.s32 1, %s19
      %s29 = scalar_select %p26, %s28, %s19
      %p30 = scmp.ge.s32.totalorder %s29, 1
      %s31 = scalar_select %p30, 0, %s29
      %s32 = ssub.s32 %s19, %s31
      %p33 = scmp.eq.s32.totalorder %s32, 0
      %s35 = sadd.s32 %s34, 1
      %s36 = scalar_select %p33, %s34, %s35
      %p39 = pneg %p33
      %p40 = scmp.eq.s32.totalorder %s12, 4
      %p41 = por %p39, %p40
      %p42 = scmp.ne.s32.totalorder %s34, %s37
      %p43 = scmp.eq.s32.totalorder %s12, 0
      %p44 = por %p42, %p43
      %p45 = scmp.ne.s32.totalorder %s34, %s37
      %p46 = scmp.eq.s32.totalorder %s17, 4
      %p47 = por %p45, %p46
      %p48 = scmp.ne.s32.totalorder %s37, %s38
      %p49 = scmp.eq.s32.totalorder %s17, 0
      %p50 = por %p48, %p49
      %p51 = scmp.ne.s32.totalorder %s37, %s38
      %p52 = scmp.eq.s32.totalorder %s18, 4
      %p53 = por %p51, %p52
      %p55 = scmp.ne.s32.totalorder %s38, %s54
      %p56 = scmp.eq.s32.totalorder %s18, 0
      %p57 = por %p55, %p56
      %s58 = ssub.s32 %s20, %s27
      %p59 = scmp.eq.s32.totalorder %s58, 0
      %s61 = sadd.s32 %s60, 1
      %s62 = scalar_select %p59, %s60, %s61
      %p65 = pneg %p59
      %p66 = scmp.eq.s32.totalorder %s12, 4
      %p67 = por %p65, %p66
      %p68 = scmp.ne.s32.totalorder %s60, %s63
      %p69 = scmp.eq.s32.totalorder %s12, 0
      %p70 = por %p68, %p69
      %p71 = scmp.ne.s32.totalorder %s60, %s63
      %p72 = scmp.eq.s32.totalorder %s17, 4
      %p73 = por %p71, %p72
      %p74 = scmp.ne.s32.totalorder %s63, %s64
      %p75 = scmp.eq.s32.totalorder %s17, 0
      %p76 = por %p74, %p75
      %p77 = scmp.ne.s32.totalorder %s63, %s64
      %p78 = scmp.eq.s32.totalorder %s18, 4
      %p79 = por %p77, %p78
      %p81 = scmp.ne.s32.totalorder %s64, %s80
      %p82 = scmp.eq.s32.totalorder %s18, 0
      %p83 = por %p81, %p82
      %s84 = ssub.s32 %s20, %s27
      %p85 = scmp.eq.s32.totalorder %s84, 0
      %s87 = sadd.s32 %s86, 1
      %s88 = scalar_select %p85, %s86, %s87
      %p91 = pneg %p85
      %p92 = scmp.eq.s32.totalorder %s12, 4
      %p93 = por %p91, %p92
      %p94 = scmp.ne.s32.totalorder %s86, %s89
      %p95 = scmp.eq.s32.totalorder %s12, 0
      %p96 = por %p94, %p95
      %p97 = scmp.ne.s32.totalorder %s86, %s89
      %p98 = scmp.eq.s32.totalorder %s17, 4
      %p99 = por %p97, %p98
      %p100 = scmp.ne.s32.totalorder %s89, %s90
      %p101 = scmp.eq.s32.totalorder %s17, 0
      %p102 = por %p100, %p101
      %p103 = scmp.ne.s32.totalorder %s89, %s90
      %p104 = scmp.eq.s32.totalorder %s18, 4
      %p105 = por %p103, %p104
      %p107 = scmp.ne.s32.totalorder %s90, %s106
      %p108 = scmp.eq.s32.totalorder %s18, 0
      %p109 = por %p107, %p108
      %s110 = ssub.s32 %s20, %s27
      %s111 = ssub.s32 %s19, %s31
      %s112 = sor.u32 %s110, %s111
      %p113 = scmp.eq.s32.totalorder %s112, 0
      %s115 = sadd.s32 %s114, 1
      %s116 = scalar_select %p113, %s114, %s115
      %p119 = pneg %p113
      %p120 = scmp.eq.s32.totalorder %s12, 4
      %p121 = por %p119, %p120
      %p122 = scmp.ne.s32.totalorder %s114, %s117
      %p123 = scmp.eq.s32.totalorder %s12, 0
      %p124 = por %p122, %p123
      %p125 = scmp.ne.s32.totalorder %s114, %s117
      %p126 = scmp.eq.s32.totalorder %s17, 4
      %p127 = por %p125, %p126
      %p128 = scmp.ne.s32.totalorder %s117, %s118
      %p129 = scmp.eq.s32.totalorder %s17, 0
      %p130 = por %p128, %p129
      %p131 = scmp.ne.s32.totalorder %s117, %s118
      %p132 = scmp.eq.s32.totalorder %s18, 4
      %p133 = por %p131, %p132
      %p135 = scmp.ne.s32.totalorder %s118, %s134
      %p136 = scmp.eq.s32.totalorder %s18, 0
      %p137 = por %p135, %p136
      %p138 = scmp.le.s32.totalorder 1, %s12
      %p139 = scmp.lt.s32.totalorder %s12, 6
      %p140 = pnand %p138, %p139
      %p141 = pneg %p140
      // Predicated region
      $region9: #{tpu_custom_call.1} parent=5 // pred_check
        _
      $region10: #{tpu_custom_call.1} parent=5 // pred_check_branch
        %143 = sbr.rel (%p140) target = $region12
      $region11: #{tpu_custom_call.1} parent=5 // pred_region
        %s144 = ssub.s32 %s12, 1
        // Predicated region
        $region13: #{tpu_custom_call.1} parent=11 // pred_check
          %p145 = pneg %p50
        $region14: #{tpu_custom_call.1} parent=11 // pred_check_branch
          %147 = sbr.rel (%p145) target = $region16
        $region15: #{tpu_custom_call.1} parent=11 // pred_region
          %p148 = scmp.lt.s32.totalorder %s21, 0
          %s149 = scalar_select %p148, %s21, 0
          %s150 = smul.addr %s149, 4
          %s151 = scalar_lea.vmem %s0, %s150
        $region16: #{tpu_custom_call.1} parent=11 // pred_fallthru
          _
      $region12: #{tpu_custom_call.1} parent=5 // pred_fallthru
        _
      %p152 = scmp.lt.s32.totalorder %s12, 5
      // Predicated region
      $region17: #{tpu_custom_call.1} parent=5 // pred_check
        %p153 = pneg %p152
      $region18: #{tpu_custom_call.1} parent=5 // pred_check_branch
        %155 = sbr.rel (%p153) target = $region20
      $region19: #{tpu_custom_call.1} parent=5 // pred_region
        // Predicated region
        $region21: #{tpu_custom_call.1} parent=19 // pred_check
          %p156 = pneg %p70
        $region22: #{tpu_custom_call.1} parent=19 // pred_check_branch
          %158 = sbr.rel (%p156) target = $region24
        $region23: #{tpu_custom_call.1} parent=19 // pred_region
          %p159 = scmp.lt.s32.totalorder %s20, 4
          %s160 = scalar_select %p159, %s20, 4
          %s161 = smul.addr %s160, 4
          %s162 = scalar_lea.vmem %s1, %s161
        $region24: #{tpu_custom_call.1} parent=19 // pred_fallthru
          _
        // Predicated region
        $region25: #{tpu_custom_call.1} parent=19 // pred_check
          %p163 = pneg %p96
        $region26: #{tpu_custom_call.1} parent=19 // pred_check_branch
          %165 = sbr.rel (%p163) target = $region28
        $region27: #{tpu_custom_call.1} parent=19 // pred_region
          %p166 = scmp.lt.s32.totalorder %s20, 4
          %s167 = scalar_select %p166, %s20, 4
          %s168 = smul.addr %s167, 4
          %s169 = scalar_lea.vmem %s2, %s168
        $region28: #{tpu_custom_call.1} parent=19 // pred_fallthru
          _
      $region20: #{tpu_custom_call.1} parent=5 // pred_fallthru
        _
      %p170 = scmp.le.s32.totalorder 1, %s12
      %p171 = scmp.lt.s32.totalorder %s12, 6
      %p172 = pnand %p170, %p171
      %p173 = pneg %p172
      // Predicated region
      $region29: #{tpu_custom_call.1} parent=5 // pred_check
        _
      $region30: #{tpu_custom_call.1} parent=5 // pred_check_branch
        %175 = sbr.rel (%p172) target = $region32
      $region31: #{tpu_custom_call.1} parent=5 // pred_region
        %s176 = ssub.s32 %s12, 1
        %p177 = scmp.lt.s32.totalorder %s21, 0
        %s178 = scalar_select %p177, %s21, 0
        %s179 = smul.addr %s178, 4
        %s180 = scalar_lea.vmem %s0, %s179
        %p181 = pneg %p50
        %p182 = pneg %p47
        %p183 = scmp.lt.s32.totalorder %s22, 4
        %s184 = scalar_select %p183, %s22, 4
        %s185 = smul.addr %s184, 4
        %s186 = scalar_lea.vmem %s1, %s185
        %p187 = pneg %p76
        %p188 = pneg %p73
        %p189 = scmp.lt.s32.totalorder %s22, 4
        %s190 = scalar_select %p189, %s22, 4
        %s191 = smul.addr %s190, 4
        %s192 = scalar_lea.vmem %s2, %s191
        %p193 = pneg %p102
        %p194 = pneg %p99
        %p195 = pneg %p130
        %p196 = pneg %p127
        %s197 = sand.u32 %s117, 1
        %s198 = scalar_lea.sflag [#allocation3], %s197
        %s199 = sand.u32 %s117, 1
        %s200 = smul.addr %s199, 4
        %s201 = scalar_lea.vmem [#allocation2], %s200
        %p202 = scmp.lt.s32.totalorder %s21, 0
        %s203 = scalar_select %p202, %s21, 0
        %s204 = smul.addr %s203, 4
        %s205 = scalar_lea.vmem %s0, %s204
        %p206 = scmp.lt.s32.totalorder %s22, 4
        %s207 = scalar_select %p206, %s22, 4
        %s208 = smul.addr %s207, 4
        %s209 = scalar_lea.vmem %s1, %s208
        %p210 = scmp.lt.s32.totalorder %s22, 4
        %s211 = scalar_select %p210, %s22, 4
        %s212 = smul.addr %s211, 4
        %s213 = scalar_lea.vmem %s2, %s212
        %v214 = vld [vmem:[%s205] sm:$0x7]
        %v215 = vld [vmem:[%s205 + $0x4] sm:$0x7]
        %v216 = vld [vmem:[%s205 + $0x8] sm:$0x7]
        %v217 = vld [vmem:[%s205 + $0xc] sm:$0x7]
        %v218 = vld [vmem:[%s209] sm:$0xf]
        %v219 = vld [vmem:[%s213] sm:$0xf]
        %221 = vset.pattern.permute.xlu0 0
        %222 = vperm.xlu0 %221, %v218
        %v223 = vpop.permute.xlu0 %222
        %v224 = vrot.slane %v223, 1
        %v225 = vrot.slane %v223, 2
        %v226 = vrot.slane %v223, 3
        %v231 = vsub.f32 %v214, %v223
        %v232 = vsub.f32 %v215, %v224
        %v233 = vsub.f32 %v216, %v225
        %v234 = vsub.f32 %v217, %v226
        %236 = vset.pattern.permute.xlu0 0
        %237 = vperm.xlu0 %236, %v219
        %v238 = vpop.permute.xlu0 %237
        %v239 = vrot.slane %v238, 1
        %v240 = vrot.slane %v238, 2
        %v241 = vrot.slane %v238, 3
        %v246 = vsub.f32 %v214, %v238
        %v247 = vsub.f32 %v215, %v239
        %v248 = vsub.f32 %v216, %v240
        %v249 = vsub.f32 %v217, %v241
        %v250 = vmul.f32 %v231, %v246
        %v251 = vmul.f32 %v232, %v247
        %v252 = vmul.f32 %v233, %v248
        %v253 = vmul.f32 %v234, %v249
        %v254 = vmul.f32 %v231, %v231
        %v255 = vmul.f32 %v232, %v232
        %v256 = vmul.f32 %v233, %v233
        %v257 = vmul.f32 %v234, %v234
        %v258 = vmul.f32 %v246, %v246
        %v259 = vmul.f32 %v247, %v247
        %v260 = vmul.f32 %v248, %v248
        %v261 = vmul.f32 %v249, %v249
        %262 = vset.pattern.permute.xlu0 1
        %263 = vperm.xlu0 %262, %v218
        %v264 = vpop.permute.xlu0 %263
        %v265 = vrot.slane %v264, 7
        %v266 = vrot.slane %v264, 1
        %v267 = vrot.slane %v264, 2
        %v272 = vsub.f32 %v214, %v265
        %v273 = vsub.f32 %v215, %v264
        %v274 = vsub.f32 %v216, %v266
        %v275 = vsub.f32 %v217, %v267
        %276 = vset.pattern.permute.xlu0 1
        %277 = vperm.xlu0 %276, %v219
        %v278 = vpop.permute.xlu0 %277
        %v279 = vrot.slane %v278, 7
        %v280 = vrot.slane %v278, 1
        %v281 = vrot.slane %v278, 2
        %v286 = vsub.f32 %v214, %v279
        %v287 = vsub.f32 %v215, %v278
        %v288 = vsub.f32 %v216, %v280
        %v289 = vsub.f32 %v217, %v281
        %v290 = vmul.f32 %v272, %v286
        %v291 = vmul.f32 %v273, %v287
        %v292 = vmul.f32 %v274, %v288
        %v293 = vmul.f32 %v275, %v289
        %v294 = vmul.f32 %v272, %v272
        %v295 = vmul.f32 %v273, %v273
        %v296 = vmul.f32 %v274, %v274
        %v297 = vmul.f32 %v275, %v275
        %v298 = vmul.f32 %v286, %v286
        %v299 = vmul.f32 %v287, %v287
        %v300 = vmul.f32 %v288, %v288
        %v301 = vmul.f32 %v289, %v289
        %v306 = vrot.slane %v290, 1
        %v307 = vrot.slane %v291, 1
        %v308 = vrot.slane %v292, 1
        %v309 = vrot.slane %v293, 1
        %v314 = vadd.f32 %v250, %v306
        %v315 = vadd.f32 %v251, %v307
        %v316 = vadd.f32 %v252, %v308
        %v317 = vadd.f32 %v253, %v309
        %v322 = vrot.slane %v294, 1
        %v323 = vrot.slane %v295, 1
        %v324 = vrot.slane %v296, 1
        %v325 = vrot.slane %v297, 1
        %v330 = vadd.f32 %v254, %v322
        %v331 = vadd.f32 %v255, %v323
        %v332 = vadd.f32 %v256, %v324
        %v333 = vadd.f32 %v257, %v325
        %v338 = vrot.slane %v298, 1
        %v339 = vrot.slane %v299, 1
        %v340 = vrot.slane %v300, 1
        %v341 = vrot.slane %v301, 1
        %v346 = vadd.f32 %v258, %v338
        %v347 = vadd.f32 %v259, %v339
        %v348 = vadd.f32 %v260, %v340
        %v349 = vadd.f32 %v261, %v341
        %350 = vset.pattern.permute.xlu0 2
        %351 = vperm.xlu0 %350, %v218
        %v352 = vpop.permute.xlu0 %351
        %v353 = vrot.slane %v352, 6
        %v354 = vrot.slane %v352, 7
        %v355 = vrot.slane %v352, 1
        %v360 = vsub.f32 %v214, %v353
        %v361 = vsub.f32 %v215, %v354
        %v362 = vsub.f32 %v216, %v352
        %v363 = vsub.f32 %v217, %v355
        %364 = vset.pattern.permute.xlu0 2
        %365 = vperm.xlu0 %364, %v219
        %v366 = vpop.permute.xlu0 %365
        %v367 = vrot.slane %v366, 6
        %v368 = vrot.slane %v366, 7
        %v369 = vrot.slane %v366, 1
        %v374 = vsub.f32 %v214, %v367
        %v375 = vsub.f32 %v215, %v368
        %v376 = vsub.f32 %v216, %v366
        %v377 = vsub.f32 %v217, %v369
        %v378 = vmul.f32 %v360, %v374
        %v379 = vmul.f32 %v361, %v375
        %v380 = vmul.f32 %v362, %v376
        %v381 = vmul.f32 %v363, %v377
        %v382 = vmul.f32 %v360, %v360
        %v383 = vmul.f32 %v361, %v361
        %v384 = vmul.f32 %v362, %v362
        %v385 = vmul.f32 %v363, %v363
        %v386 = vmul.f32 %v374, %v374
        %v387 = vmul.f32 %v375, %v375
        %v388 = vmul.f32 %v376, %v376
        %v389 = vmul.f32 %v377, %v377
        %v394 = vrot.slane %v378, 2
        %v395 = vrot.slane %v379, 2
        %v396 = vrot.slane %v380, 2
        %v397 = vrot.slane %v381, 2
        %v402 = vadd.f32 %v314, %v394
        %v403 = vadd.f32 %v315, %v395
        %v404 = vadd.f32 %v316, %v396
        %v405 = vadd.f32 %v317, %v397
        %v410 = vrot.slane %v382, 2
        %v411 = vrot.slane %v383, 2
        %v412 = vrot.slane %v384, 2
        %v413 = vrot.slane %v385, 2
        %v418 = vadd.f32 %v330, %v410
        %v419 = vadd.f32 %v331, %v411
        %v420 = vadd.f32 %v332, %v412
        %v421 = vadd.f32 %v333, %v413
        %v426 = vrot.slane %v386, 2
        %v427 = vrot.slane %v387, 2
        %v428 = vrot.slane %v388, 2
        %v429 = vrot.slane %v389, 2
        %v434 = vadd.f32 %v346, %v426
        %v435 = vadd.f32 %v347, %v427
        %v436 = vadd.f32 %v348, %v428
        %v437 = vadd.f32 %v349, %v429
        %v438 = vmax.f32 %v418, 1e-12
        %v439 = vmax.f32 %v419, 1e-12
        %v440 = vmax.f32 %v420, 1e-12
        %v441 = vmax.f32 %v421, 1e-12
        %v442 = vrsqrt.pop %v438
        %v443 = vrsqrt.pop %v439
        %v444 = vrsqrt.pop %v440
        %v445 = vrsqrt.pop %v441
        %v446 = vmax.f32 %v434, 1e-12
        %v447 = vmax.f32 %v435, 1e-12
        %v448 = vmax.f32 %v436, 1e-12
        %v449 = vmax.f32 %v437, 1e-12
        %v450 = vrsqrt.pop %v446
        %v451 = vrsqrt.pop %v447
        %v452 = vrsqrt.pop %v448
        %v453 = vrsqrt.pop %v449
        %v454 = vmul.f32 %v402, %v442
        %v455 = vmul.f32 %v403, %v443
        %v456 = vmul.f32 %v404, %v444
        %v457 = vmul.f32 %v405, %v445
        %v458 = vmul.f32 %v454, %v450
        %v459 = vmul.f32 %v455, %v451
        %v460 = vmul.f32 %v456, %v452
        %v461 = vmul.f32 %v457, %v453
        %v466 = vrot.slane %v459, 7
        %vm467 = vcmask 1041409
        %v468 = vsel %vm467, %v466, %v458
        %v469 = vrot.slane %v460, 6
        %vm470 = vcmask 1042434
        %v471 = vsel %vm470, %v469, %v468
        %v472 = vrot.slane %v461, 5
        %vm473 = vcmask 1043459
        %v474 = vsel %vm473, %v472, %v471
        %vm476 = vcmask 519168
        %477 = vst.msk [vmem:[%s201] sm:$0xf] %vm476, %v474
        %s478 = sand.u32 %s117, 1
        %s479 = scalar_lea.sflag [#allocation3], %s478
        %s480 = sand.u32 %s117, 1
        %s481 = smul.addr %s480, 4
        %s482 = scalar_lea.vmem [#allocation2], %s481
        // Predicated region
        $region33: #{tpu_custom_call.1} parent=31 // pred_check
          %p483 = pneg %p127
        $region34: #{tpu_custom_call.1} parent=31 // pred_check_branch
          %485 = sbr.rel (%p483) target = $region36
        $region35: #{tpu_custom_call.1} parent=31 // pred_region
          %s487 = ssub.s32 64, 64
          %488 = vsyncadd %s479, %s487
          %s489 = sadd.s32 %s21, %s22
          %s490 = smul.addr %s489, 64
          %s491 = scalar_lea.hbm %s3, %s490
          %s493 = sshll.u32 %s482, 4
          %s494 = int_to_ptr.vmem [resolvable:$true] %s493
          %496 = dma.vmem_to_hbm [thread:$0]  %s494, 64, %s491, %s479
        $region36: #{tpu_custom_call.1} parent=31 // pred_fallthru
          _
      $region32: #{tpu_custom_call.1} parent=5 // pred_fallthru
        _
      %p497 = scmp.le.s32.totalorder 2, %s12
      // Predicated region
      $region37: #{tpu_custom_call.1} parent=5 // pred_check
        %p498 = pneg %p497
      $region38: #{tpu_custom_call.1} parent=5 // pred_check_branch
        %500 = sbr.rel (%p498) target = $region40
      $region39: #{tpu_custom_call.1} parent=5 // pred_region
        %s501 = ssub.s32 %s12, 2
        // Predicated region
        $region41: #{tpu_custom_call.1} parent=39 // pred_check
          %p502 = pneg %p133
        $region42: #{tpu_custom_call.1} parent=39 // pred_check_branch
          %504 = sbr.rel (%p502) target = $region44
        $region43: #{tpu_custom_call.1} parent=39 // pred_region
          %s505 = sand.u32 %s118, 1
          %s506 = scalar_lea.sflag [#allocation3], %s505
          %s507 = sand.u32 %s118, 1
          %s508 = smul.addr %s507, 4
          %s509 = scalar_lea.vmem [#allocation2], %s508
          %510 = dma.done %s506, 64
        $region44: #{tpu_custom_call.1} parent=39 // pred_fallthru
          _
      $region40: #{tpu_custom_call.1} parent=5 // pred_fallthru
        _
    $region6: #{tpu_custom_call.1} parent=1 // loop_footer
      %s16 = sadd.s32 1, %s12
    $region7: #{tpu_custom_call.1} parent=1 // loop_footer_branch
      %11 = sbr.rel target = $region3
    $region8: #{tpu_custom_call.1} parent=1 // loop_exit
      _
    %511 = vsyncpa [#allocation3], 1
    %s512 = scalar_lea.sflag [#allocation3], 1
    %513 = vsyncpa %s512, 1

</llo_original>
